<compile_context>
chip_gen: v7x
topology: tpu7x:2x2x1
jax: 0.10.0
libtpu: 0.0.40
codegen_flags: <defaults>
</compile_context>

<pallas_src>
import functools

import jax
import jax.numpy as jnp
from jax.experimental import pallas as pl
from jax.experimental.pallas import tpu as pltpu


def _round_up(x, m):
    return (x + m - 1) // m * m


def _combined_multihead_loss_kernel(
    pred_ref, tgt_ref, mask_ref, out_ref, *, no_of_heads, batch_size, tile_b
):
    # pred_ref: [TB, C] native dtype ; tgt_ref: [TB, 1] i32 ;
    # mask_ref: [C, Hp] f32 prefix mask ; out_ref: [1, 1] f32 (SMEM, per tile).
    i = pl.program_id(0)

    x = pred_ref[...].astype(jnp.float32)               # f32 accumulation
    t = tgt_ref[...]                                     # [TB, 1]
    tb, c = x.shape

    # Target logit via one-hot select (no dynamic lane gather on TPU).
    lane = jax.lax.broadcasted_iota(jnp.int32, (tb, c), 1)
    tgt_logit = jnp.sum(jnp.where(lane == t, x, 0.0), axis=-1, keepdims=True)

    # Single exp pass + one MXU matmul -> every prefix sum at once.
    m_row = jnp.max(x, axis=-1, keepdims=True)           # [TB, 1]  (XLU)
    e = jnp.exp(x - m_row)                                # [TB, C]  (one EUP pass)
    prefix = jnp.dot(e, mask_ref[...],
                     preferred_element_type=jnp.float32)  # [TB, Hp] (MXU)

    hp = prefix.shape[-1]
    head = jax.lax.broadcasted_iota(jnp.int32, (tb, hp), 1)
    # Padded head columns have prefix == 0 -> log is -inf, but jnp.where
    # selects 0.0 there so nothing propagates (forward-only kernel).
    lse = jnp.where(head < no_of_heads, m_row + jnp.log(prefix), 0.0)  # [TB, Hp]
    sum_lse = jnp.sum(lse, axis=-1, keepdims=True)        # [TB, 1]

    # Per-row contribution; mask out batch-padding rows of the last tile.
    row = jax.lax.broadcasted_iota(jnp.int32, (tb, 1), 0) + i * tile_b
    contrib = jnp.where(
        row < batch_size,
        sum_lse - jnp.float32(no_of_heads) * tgt_logit,
        0.0,
    )
    out_ref[0, 0] = jnp.sum(contrib)                      # per-tile partial sum


def combined_multihead_loss(head_predictions, targets, no_of_heads, *, tile_b=1024):
    """sum_{idx=1..H} CrossEntropy(head_predictions[:, :2*idx], targets)."""
    b, c = head_predictions.shape
    assert c == 2 * no_of_heads, "head_predictions last dim must be 2 * no_of_heads"
    tgt2d = targets.astype(jnp.int32).reshape(b, 1)

    # Batch tile: multiple of 8 sublanes, capped at tile_b; pad B up to a
    # whole number of tiles (padded rows are masked inside the kernel).
    tb = min(tile_b, _round_up(b, 8))
    num_tiles = pl.cdiv(b, tb)
    b_pad = num_tiles * tb
    if b_pad != b:
        head_predictions = jnp.pad(head_predictions, ((0, b_pad - b), (0, 0)))
        tgt2d = jnp.pad(tgt2d, ((0, b_pad - b), (0, 0)))

    # Constant [C, Hp] prefix mask: mask[cl, h] = 1 iff class cl belongs to the
    # slice of head h (cl < 2*(h+1)) and h < no_of_heads; lane-padded to 128.
    hp = _round_up(max(no_of_heads, 1), 128)
    cls_idx = jnp.arange(c, dtype=jnp.int32)[:, None]
    head_idx = jnp.arange(hp, dtype=jnp.int32)[None, :]
    prefix_mask = (
        (cls_idx < 2 * (head_idx + 1)) & (head_idx < no_of_heads)
    ).astype(jnp.float32)

    kernel = functools.partial(
        _combined_multihead_loss_kernel,
        no_of_heads=no_of_heads,
        batch_size=b,
        tile_b=tb,
    )
    partials = pl.pallas_call(
        kernel,
        out_shape=jax.ShapeDtypeStruct((num_tiles, 1), jnp.float32),
        grid=(num_tiles,),
        in_specs=[
            pl.BlockSpec((tb, c), lambda i: (i, 0)),      # predictions tile
            pl.BlockSpec((tb, 1), lambda i: (i, 0)),      # targets tile
            pl.BlockSpec((c, hp), lambda i: (0, 0)),      # constant prefix mask
        ],
        out_specs=pl.BlockSpec(
            (1, 1), lambda i: (i, 0), memory_space=pltpu.MemorySpace.SMEM
        ),
        compiler_params=pltpu.CompilerParams(
            dimension_semantics=("parallel",),
        ),
    )(head_predictions, tgt2d, prefix_mask)

    return jnp.sum(partials) / jnp.float32(b)


def _reference_loss(pred, targets, no_of_heads):
    # Pure-JAX reference of the PyTorch forward with nn.CrossEntropyLoss().
    total = jnp.float32(0.0)
    for idx in range(1, no_of_heads + 1):
        p = pred[:, : 2 * idx].astype(jnp.float32)
        lse = jax.scipy.special.logsumexp(p, axis=-1)
        tl = p[jnp.arange(p.shape[0]), targets]
        total = total + jnp.mean(lse - tl)
    return total


if __name__ == "__main__":
    key = jax.random.PRNGKey(0)
    k_pred, k_tgt, k_pred2, k_tgt2 = jax.random.split(key, 4)

    # Case 1: small single-tile problem (B=8, H=4 -> C=8).
    no_of_heads = 4
    batch = 8
    head_predictions = jax.random.normal(
        k_pred, (batch, 2 * no_of_heads), dtype=jnp.float32
    )
    targets = jax.random.randint(k_tgt, (batch,), 0, 2, dtype=jnp.int32)

    out = combined_multihead_loss(head_predictions, targets, no_of_heads)
    out = jax.block_until_ready(out)
    ref = _reference_loss(head_predictions, targets, no_of_heads)
    assert jnp.allclose(out, ref, rtol=1e-5, atol=1e-5), (out, ref)

    # Case 2: batch not a multiple of the tile -> exercises the multi-tile grid
    # (3 tiles) and padded-row masking.
    no_of_heads2 = 3
    batch2 = 20
    preds2 = jax.random.normal(k_pred2, (batch2, 2 * no_of_heads2), jnp.float32)
    targets2 = jax.random.randint(k_tgt2, (batch2,), 0, 2, dtype=jnp.int32)

    out2 = combined_multihead_loss(preds2, targets2, no_of_heads2, tile_b=8)
    out2 = jax.block_until_ready(out2)
    ref2 = _reference_loss(preds2, targets2, no_of_heads2)
    assert jnp.allclose(out2, ref2, rtol=1e-5, atol=1e-5), (out2, ref2)

    print("KERNEL_OK")
</pallas_src>

<mosaic_0001>
module attributes {stable_mosaic.version = 11 : i64} {
  func.func @_combined_multihead_loss_kernel(%arg0: i32, %arg1: memref<8x8xf32, #tpu.memory_space<vmem>>, %arg2: memref<8x1xi32, #tpu.memory_space<vmem>>, %arg3: memref<8x128xf32, #tpu.memory_space<vmem>>, %arg4: memref<1x1xf32, #tpu.memory_space<smem>>) attributes {dimension_semantics = [#tpu.dimension_semantics<parallel>], iteration_bounds = array<i64: 1>, scalar_prefetch = 0 : i64, scratch_operands = 0 : i64, tpu.core_type = #tpu.core_type<tc>, window_params = [{transform_indices = @transform_0, window_bounds = array<i64: 8, 8>}, {transform_indices = @transform_1, window_bounds = array<i64: 8, 1>}, {pipeline_mode = #tpu.pipeline_mode<synchronous>, transform_indices = @transform_2, window_bounds = array<i64: 8, 128>}, {transform_indices = @transform_3, window_bounds = array<i64: 1, 1>}]} {
    %c0 = arith.constant 0 : index
    %c0_0 = arith.constant 0 : index
    %0 = vector.load %arg1[%c0, %c0_0] : memref<8x8xf32, #tpu.memory_space<vmem>>, vector<8x8xf32>
    %c0_1 = arith.constant 0 : index
    %c0_2 = arith.constant 0 : index
    %1 = vector.load %arg2[%c0_1, %c0_2] : memref<8x1xi32, #tpu.memory_space<vmem>>, vector<8x1xi32>
    %2 = tpu.iota {dimensions = array<i32: 1>} : vector<8x8xi32>
    %3 = vector.broadcast %1 : vector<8x1xi32> to vector<8x8xi32>
    %4 = arith.cmpi eq, %2, %3 : vector<8x8xi32>
    %cst = arith.constant 0.000000e+00 : f32
    %5 = vector.broadcast %cst : f32 to vector<8x8xf32>
    %6 = arith.select %4, %0, %5 : vector<8x8xi1>, vector<8x8xf32>
    %cst_3 = arith.constant dense<0.000000e+00> : vector<8xf32>
    %7 = vector.multi_reduction <add>, %6, %cst_3 [1] : vector<8x8xf32> to vector<8xf32>
    %8 = vector.shape_cast %7 : vector<8xf32> to vector<8x1xf32>
    %cst_4 = arith.constant dense<0xFF800000> : vector<8xf32>
    %9 = vector.multi_reduction <maximumf>, %0, %cst_4 [1] : vector<8x8xf32> to vector<8xf32>
    %10 = vector.shape_cast %9 : vector<8xf32> to vector<8x1xf32>
    %11 = vector.broadcast %10 : vector<8x1xf32> to vector<8x8xf32>
    %12 = arith.subf %0, %11 : vector<8x8xf32>
    %13 = math.exp %12 : vector<8x8xf32>
    %c0_5 = arith.constant 0 : index
    %c0_6 = arith.constant 0 : index
    %14 = vector.load %arg3[%c0_5, %c0_6] : memref<8x128xf32, #tpu.memory_space<vmem>>, vector<8x128xf32>
    %cst_7 = arith.constant dense<0.000000e+00> : vector<8x128xf32>
    %15 = tpu.matmul %13, %14, %cst_7 {dimension_numbers = #tpu.dot_dimension_numbers<[1], [0], [0], [1], [0, 0, 1, 1], [], []>} : vector<8x8xf32>, vector<8x128xf32>, vector<8x128xf32> -> vector<8x128xf32>
    %16 = tpu.iota {dimensions = array<i32: 1>} : vector<8x128xi32>
    %c4_i32 = arith.constant 4 : i32
    %17 = vector.broadcast %c4_i32 : i32 to vector<8x128xi32>
    %18 = arith.cmpi slt, %16, %17 : vector<8x128xi32>
    %19 = math.log %15 : vector<8x128xf32>
    %20 = vector.broadcast %10 : vector<8x1xf32> to vector<8x128xf32>
    %21 = arith.addf %20, %19 : vector<8x128xf32>
    %cst_8 = arith.constant 0.000000e+00 : f32
    %22 = vector.broadcast %cst_8 : f32 to vector<8x128xf32>
    %23 = arith.select %18, %21, %22 : vector<8x128xi1>, vector<8x128xf32>
    %cst_9 = arith.constant dense<0.000000e+00> : vector<8xf32>
    %24 = vector.multi_reduction <add>, %23, %cst_9 [1] : vector<8x128xf32> to vector<8xf32>
    %25 = vector.shape_cast %24 : vector<8xf32> to vector<8x1xf32>
    %26 = tpu.iota {dimensions = array<i32: 0>} : vector<8x1xi32>
    %c8_i32 = arith.constant 8 : i32
    %27 = arith.muli %arg0, %c8_i32 : i32
    %28 = vector.broadcast %27 : i32 to vector<8x1xi32>
    %29 = arith.addi %26, %28 : vector<8x1xi32>
    %c8_i32_10 = arith.constant 8 : i32
    %30 = vector.broadcast %c8_i32_10 : i32 to vector<8x1xi32>
    %31 = arith.cmpi slt, %29, %30 : vector<8x1xi32>
    %cst_11 = arith.constant 4.000000e+00 : f32
    %32 = vector.broadcast %cst_11 : f32 to vector<8x1xf32>
    %33 = arith.mulf %32, %8 : vector<8x1xf32>
    %34 = arith.subf %25, %33 : vector<8x1xf32>
    %cst_12 = arith.constant 0.000000e+00 : f32
    %35 = vector.broadcast %cst_12 : f32 to vector<8x1xf32>
    %36 = arith.select %31, %34, %35 : vector<8x1xi1>, vector<8x1xf32>
    %37 = vector.shape_cast %36 : vector<8x1xf32> to vector<1x8x1xf32>
    %cst_13 = arith.constant dense<0.000000e+00> : vector<1xf32>
    %38 = vector.multi_reduction <add>, %37, %cst_13 [1, 2] : vector<1x8x1xf32> to vector<1xf32>
    %39 = vector.shape_cast %38 : vector<1xf32> to vector<1x1x1xf32>
    %40 = vector.extract %39[0, 0, 0] : f32 from vector<1x1x1xf32>
    %c0_14 = arith.constant 0 : index
    %c0_15 = arith.constant 0 : index
    %41 = memref.load %arg4[%c0_14, %c0_15] : memref<1x1xf32, #tpu.memory_space<smem>>
    memref.store %40, %arg4[%c0_14, %c0_15] : memref<1x1xf32, #tpu.memory_space<smem>>
    return
  }
  func.func @transform_0(%arg0: i32) -> (i32, i32) {
    %c0_i32 = arith.constant 0 : i32
    %c0_i32_0 = arith.constant 0 : i32
    return %arg0, %c0_i32 : i32, i32
  }
  func.func @transform_1(%arg0: i32) -> (i32, i32) {
    %c0_i32 = arith.constant 0 : i32
    %c0_i32_0 = arith.constant 0 : i32
    return %arg0, %c0_i32 : i32, i32
  }
  func.func @transform_2(%arg0: i32) -> (i32, i32) {
    %c0_i32 = arith.constant 0 : i32
    %c0_i32_0 = arith.constant 0 : i32
    %c0_i32_1 = arith.constant 0 : i32
    return %c0_i32, %c0_i32_0 : i32, i32
  }
  func.func @transform_3(%arg0: i32) -> (i32, i32) {
    %c0_i32 = arith.constant 0 : i32
    %c0_i32_0 = arith.constant 0 : i32
    return %arg0, %c0_i32 : i32, i32
  }
}

</mosaic_0001>

<llo_original>
// kernel: tpu_custom_call.1
$region0: #{tpu_custom_call.1}
  #allocation0 [shape = 'u32[]', space=smem, size = 0x4, offset = 0x4, fixed_abs, tag = 'smem constant byte address 0x4 - core index']
  #allocation1 [shape = 'u32[144,128]{1,0:T(1,128)}', space=vmem, size = 0x12000, scoped, tag = 'internal scratch']
  %s0 = inlined_call_operand.vmem [shape: f32[8,8], index: 0, kind: input, shape index: {}]
  %s1 = inlined_call_operand.vmem [shape: s32[8,1], index: 1, kind: input, shape index: {}]
  %s2 = inlined_call_operand.vmem [shape: f32[8,128], index: 2, kind: input, shape index: {}]
  %s3 = inlined_call_operand.hbm [shape: f32[1,1], index: 3, kind: output, shape index: {}]
  %s4 = sld [smem:[#allocation0]]
  $region22: #{tpu_custom_call.1} parent=0
    _
  %s6 = ssub.s32 1, %s4
  %s7 = scalar_select 0, %s6, %s4
  $region1: #{tpu_custom_call.1} parent=0
    #allocation2 [shape = 'u8[512]{0}', space=smem, size = 0x200, scoped, tag = 'output window, operand 0, single buffered']
    #allocation3 [shape = 's32[1]{0}', space=sflag, size = 0x4, scoped, tag = 'scoped memory for tpu_custom_call.1']
    %8 = vsyncpa [#allocation3], 0
    // Predicated region
    $region2: #{tpu_custom_call.1} parent=1 // pred_check
      _
    $region3: #{tpu_custom_call.1} parent=1 // pred_check_branch
      %10 = sbr.rel (0) target = $region5
    $region4: #{tpu_custom_call.1} parent=1 // pred_region
      _
    $region5: #{tpu_custom_call.1} parent=1 // pred_fallthru
      _
    // Predicated region
    $region6: #{tpu_custom_call.1} parent=1 // pred_check
      _
    $region7: #{tpu_custom_call.1} parent=1 // pred_check_branch
      %12 = sbr.rel (0) target = $region9
    $region8: #{tpu_custom_call.1} parent=1 // pred_region
      _
    $region9: #{tpu_custom_call.1} parent=1 // pred_fallthru
      _
    // Predicated region
    $region10: #{tpu_custom_call.1} parent=1 // pred_check
      _
    $region11: #{tpu_custom_call.1} parent=1 // pred_check_branch
      %14 = sbr.rel (0) target = $region13
    $region12: #{tpu_custom_call.1} parent=1 // pred_region
      _
    $region13: #{tpu_custom_call.1} parent=1 // pred_fallthru
      _
    %v15 = vld [vmem:[%s0] sm:$0xff]
    %v16 = vld [vmem:[%s1] sm:$0xff]
    %v17 = vlaneseq
    %v18 = vand.u32 %v17, 127
    %19 = vset.pattern.permute.xlu0 0
    %20 = vperm.xlu0 %19, %v16
    %v21 = vpop.permute.xlu0 %20
    %vm22 = vcmp.eq.s32.totalorder %v18, %v21
    %v23 = vsel %vm22, %v15, 0.0
    %vm24 = vcmask 64512
    %v25 = vsel %vm24, %v23, 0.0
    %26 = vadd.xlane.f32.xlu0 %v25
    %v27 = vpop.xlane.xlu0 %26
    %v28 = vsel %vm24, %v15, -inf
    %29 = vmax.xlane.f32.xlu0 %v28
    %v30 = vpop.xlane.xlu0 %29
    %v31 = vsub.f32 %v15, %v30
    %v32 = vmul.f32 %v31, 1.442695
    %v33 = vpow.pop %v32
    %v34 = vld [vmem:[%s2] sm:$0xff]
    %v36 = vsel %vm24, %v33, 0
    %38 = vmatprep.subr.mxu0 0.0
    %39 = vmatpush1.msra.mxu0 %v34
    %40 = vmatprep.subr.mxu0 0.0
    %41 = vmatpush1.msra.mxu0 0.0
    %42 = vmatprep.subr.mxu0 0.0
    %43 = vmatpush1.msra.mxu0 0.0
    %44 = vmatprep.subr.mxu0 0.0
    %45 = vmatpush1.msra.mxu0 0.0
    %46 = vmatprep.subr.mxu0 0.0
    %47 = vmatpush1.msra.mxu0 0.0
    %48 = vmatprep.subr.mxu0 0.0
    %49 = vmatpush1.msra.mxu0 0.0
    %50 = vmatprep.subr.mxu0 0.0
    %51 = vmatpush1.msra.mxu0 0.0
    %52 = vmatprep.subr.mxu0 0.0
    %53 = vmatpush1.msra.mxu0 0.0
    %54 = vmatprep.subr.mxu0 0.0
    %55 = vmatpush1.msra.mxu0 0.0
    %56 = vmatprep.subr.mxu0 0.0
    %57 = vmatpush1.msra.mxu0 0.0
    %58 = vmatprep.subr.mxu0 0.0
    %59 = vmatpush1.msra.mxu0 0.0
    %60 = vmatprep.subr.mxu0 0.0
    %61 = vmatpush1.msra.mxu0 0.0
    %62 = vmatprep.subr.mxu0 0.0
    %63 = vmatpush1.msra.mxu0 0.0
    %64 = vmatprep.subr.mxu0 0.0
    %65 = vmatpush1.msra.mxu0 0.0
    %66 = vmatprep.subr.mxu0 0.0
    %67 = vmatpush1.msra.mxu0 0.0
    %68 = vmatprep.subr.mxu0 0.0
    %69 = vmatpush1.msra.mxu0 0.0
    %70 = vmatprep.subr.mxu0 0.0
    %71 = vmatpush1.msra.mxu0 0.0
    %72 = vmatprep.subr.mxu0 0.0
    %73 = vmatpush1.msra.mxu0 0.0
    %74 = vmatprep.subr.mxu0 0.0
    %75 = vmatpush1.msra.mxu0 0.0
    %76 = vmatprep.subr.mxu0 0.0
    %77 = vmatpush1.msra.mxu0 0.0
    %78 = vmatprep.subr.mxu0 0.0
    %79 = vmatpush1.msra.mxu0 0.0
    %80 = vmatprep.subr.mxu0 0.0
    %81 = vmatpush1.msra.mxu0 0.0
    %82 = vmatprep.subr.mxu0 0.0
    %83 = vmatpush1.msra.mxu0 0.0
    %84 = vmatprep.subr.mxu0 0.0
    %85 = vmatpush1.msra.mxu0 0.0
    %86 = vmatprep.subr.mxu0 0.0
    %87 = vmatpush1.msra.mxu0 0.0
    %88 = vmatprep.subr.mxu0 0.0
    %89 = vmatpush1.msra.mxu0 0.0
    %90 = vmatprep.subr.mxu0 0.0
    %91 = vmatpush1.msra.mxu0 0.0
    %92 = vmatprep.subr.mxu0 0.0
    %93 = vmatpush1.msra.mxu0 0.0
    %94 = vmatprep.subr.mxu0 0.0
    %95 = vmatpush1.msra.mxu0 0.0
    %96 = vmatprep.subr.mxu0 0.0
    %97 = vmatpush1.msra.mxu0 0.0
    %98 = vmatprep.subr.mxu0 0.0
    %99 = vmatpush1.msra.mxu0 0.0
    %100 = vmatprep.subr.mxu0 0.0
    %101 = vmatpush1.msra.mxu0 0.0
    %102 = vmatprep.mubr.f32.mxu0 0.0
    %103 = vmatmul.mubr.f32.gmra.mrb[0].mxu0 %v36
    %v104 = vpop.f32.mrb[0].mxu0
    %v105 = vadd.f32 0.0, %v104
    %v106 = vpop.f32.mrb[0].mxu0
    %107 = vdwg.mxu0
    %vm108 = vcmp.lt.s32.totalorder %v18, 4
    %v109 = vlog2.pop %v105
    %v110 = vmul.f32 %v109, 0.6931472
    %v111 = vadd.f32 %v30, %v110
    %v112 = vsel %vm108, %v111, 0.0
    %113 = vadd.xlane.f32.xlu0 %v112
    %v114 = vpop.xlane.xlu0 %113
    %v115 = vlaneseq
    %v116 = vshrl.u32 %v115, 7
    %s117 = smul.u32 0, 8
    %v118 = vstv %s117
    %v119 = vadd.s32 %v116, %v118
    %vm120 = vcmp.lt.s32.totalorder %v119, 8
    %v121 = vmul.f32 %v27, 4.0
    %v122 = vsub.f32 %v114, %v121
    %v123 = vsel %vm120, %v122, 0.0
    %vm124 = vcmask 7168
    %v125 = vsel %vm124, %v123, 0.0
    %126 = vadd.xlane.f32.xlu0 %v125
    %v127 = vpop.xlane.xlu0 %126
    %v128 = vrot.slane %v127, 4
    %v129 = vadd.f32 %v127, %v128
    %v130 = vrot.slane %v129, 2
    %v131 = vadd.f32 %v129, %v130
    %v132 = vrot.slane %v131, 1
    %v133 = vadd.f32 %v131, %v132
    %s134 = vtos %v133
    %s135 = scalar_lea.smem [#allocation2], 0
    %136 = sst [smem:[%s135]] %s134
    // Predicated region
    $region14: #{tpu_custom_call.1} parent=1 // pred_check
      _
    $region15: #{tpu_custom_call.1} parent=1 // pred_check_branch
      %138 = sbr.rel (0) target = $region17
    $region16: #{tpu_custom_call.1} parent=1 // pred_region
      %s140 = ssub.s32 16, 16
      %141 = vsyncadd [#allocation3], %s140
      %144 = dma.smem_to_hbm [#allocation2], 16, %s3, [#allocation3]
    $region17: #{tpu_custom_call.1} parent=1 // pred_fallthru
      _
    // Predicated region
    $region18: #{tpu_custom_call.1} parent=1 // pred_check
      _
    $region19: #{tpu_custom_call.1} parent=1 // pred_check_branch
      %146 = sbr.rel (0) target = $region21
    $region20: #{tpu_custom_call.1} parent=1 // pred_region
      %147 = dma.done [#allocation3], 16
    $region21: #{tpu_custom_call.1} parent=1 // pred_fallthru
      _
    %148 = sfence
    %149 = vsyncpa [#allocation3], 1

</llo_original>
